<compile_context>
chip_gen: v7x
topology: tpu7x:2x2x1
jax: 0.10.0
libtpu: 0.0.40
codegen_flags: <defaults>
</compile_context>

<pallas_src>
import functools

import jax
import jax.numpy as jnp
from jax.experimental import pallas as pl
from jax.experimental.pallas import tpu as pltpu


def _round_up(x, m):
    return ((x + m - 1) // m) * m


def _cdiv(a, b):
    return -(-a // b)


def _rq_kernel(inv_ref, neg_a2_ref, log_s2_ref, loc1_ref, loc2t_ref,
               out_ref, sdist_ref, *, d_real, use_mxu):
    """One grid step: (i, j) selects a (tm, tn) tile, k selects the parameter set."""
    k = pl.program_id(2)

    # Squared euclidean distances for this tile: computed once (k == 0), reused for
    # every k.  Padded/edge lanes may hold garbage; they are never stored (masked).
    @pl.when(k == 0)
    def _():
        x = loc1_ref[...].astype(jnp.float32)      # (tm, Dp)
        yt = loc2t_ref[...].astype(jnp.float32)    # (Dp, tn)
        if use_mxu:
            # Large-D path: cross term on the MXU, full-f32 contraction.
            xx = jnp.sum(x * x, axis=-1, keepdims=True)      # (tm, 1)
            yy = jnp.sum(yt * yt, axis=0, keepdims=True)     # (1, tn)
            xy = jnp.dot(x, yt, preferred_element_type=jnp.float32,
                         precision=jax.lax.Precision.HIGHEST)
            sdist_ref[...] = jnp.maximum(xx + yy - 2.0 * xy, 0.0)
        else:
            # Small-D path: direct diff² on the VPU, no cancellation, no MXU.
            sd = jnp.zeros_like(sdist_ref)
            for d in range(d_real):                          # unrolled, D is static
                diff = x[:, d:d + 1] - yt[d:d + 1, :]        # (tm, tn) broadcast
                sd = sd + diff * diff
            sdist_ref[...] = sd

    # Per-k epilogue: base**(-a2) == exp(-a2*log(base)); scale² folded into the exp
    # argument via log_s2.  2 EUP transcendentals + 2 VPU ops per element per k.
    base = 1.0 + sdist_ref[...] * inv_ref[k]
    out_ref[0, :, :] = jnp.exp(
        log_s2_ref[k] + neg_a2_ref[k] * jnp.log(base)
    ).astype(out_ref.dtype)


def rq_kernel_forward(scale, alpha, lengthscale, locations1, locations2,
                      *, tm=512, tn=1024, out_dtype=None):
    """Pallas implementation of RQKernel.forward.

    scale, alpha, lengthscale : (K,) float32
    locations1                : (M, D) float32
    locations2                : (N, D) float32
    returns                   : (K, M, N) float32 (or out_dtype, e.g. bf16 on v5e)
    """
    K = scale.shape[0]
    M, D = locations1.shape
    N, _ = locations2.shape
    out_dtype = locations1.dtype if out_dtype is None else out_dtype

    # Lane/sublane-aligned tiles, clamped to the (rounded) problem size.
    tm = max(8, min(tm, _round_up(M, 8)))
    tn = max(128, min(tn, _round_up(N, 128)))
    # Keep >= 2 (i, j) tiles whenever possible so both v7x TensorCores get work
    # (harmless on single-TC v5e/v6e; only triggers for small problems).
    while _cdiv(M, tm) * _cdiv(N, tn) < 2:
        if tn > 128:
            tn //= 2
        elif tm > 8:
            tm //= 2
        else:
            break

    # Pad only the feature dim to a sublane multiple (zeros do not perturb distances).
    # M / N are NOT padded: the cdiv grid + masked edge stores handle the remainders.
    Dp = _round_up(D, 8)
    loc1 = jnp.zeros((M, Dp), locations1.dtype).at[:, :D].set(locations1)
    loc2t = jnp.zeros((Dp, N), locations2.dtype).at[:D, :].set(locations2.T)

    # Host-side per-k scalars (SMEM): divide + scale multiply removed from the kernel.
    a2 = (alpha * alpha).astype(jnp.float32)
    l2 = (lengthscale * lengthscale).astype(jnp.float32)
    inv = 1.0 / (2.0 * a2 * l2)
    neg_a2 = -a2
    log_s2 = jnp.log((scale * scale).astype(jnp.float32))
    # TODO(synk): on v7x (EUP-bound) duplicated (alpha, lengthscale) pairs could be
    # deduped in the wrapper to cut log/exp work; not needed for correctness.

    grid = (_cdiv(M, tm), _cdiv(N, tn), K)
    use_mxu = D >= 64  # direct VPU diff² path for small D (the RP-GPFA regime)

    kernel = functools.partial(_rq_kernel, d_real=D, use_mxu=use_mxu)

    cost = pl.CostEstimate(
        flops=int(2 * M * N * Dp + 6 * K * M * N),
        transcendentals=int(2 * K * M * N),
        bytes_accessed=int(4 * (K * M * N + M * Dp + N * Dp)),
    )

    grid_spec = pltpu.PrefetchScalarGridSpec(
        num_scalar_prefetch=0,
        grid=grid,
        in_specs=[
            pl.BlockSpec(memory_space=pltpu.MemorySpace.SMEM),   # inv      (K,)
            pl.BlockSpec(memory_space=pltpu.MemorySpace.SMEM),   # -alpha²  (K,)
            pl.BlockSpec(memory_space=pltpu.MemorySpace.SMEM),   # log s²   (K,)
            pl.BlockSpec((tm, Dp), lambda i, j, k: (i, 0)),      # locations1 tile
            pl.BlockSpec((Dp, tn), lambda i, j, k: (0, j)),      # locations2ᵀ tile
        ],
        out_specs=pl.BlockSpec((1, tm, tn), lambda i, j, k: (k, i, j)),
        scratch_shapes=[pltpu.VMEM((tm, tn), jnp.float32)],      # sdist, reused over K
    )

    return pl.pallas_call(
        kernel,
        out_shape=jax.ShapeDtypeStruct((K, M, N), out_dtype),
        grid_spec=grid_spec,
        compiler_params=pltpu.CompilerParams(
            dimension_semantics=("parallel", "parallel", "arbitrary"),
        ),
        cost_estimate=cost,
    )(inv, neg_a2, log_s2, loc1, loc2t)


def rq_kernel_reference(scale, alpha, lengthscale, locations1, locations2):
    """Plain-JAX reference mirroring the PyTorch forward exactly."""
    diff = locations1[:, None, :] - locations2[None, :, :]
    sdist = jnp.sum(diff * diff, axis=-1)[None]            # (1, M, N)
    s2 = (scale ** 2)[:, None, None]
    a2 = (alpha ** 2)[:, None, None]
    l2 = (lengthscale ** 2)[:, None, None]
    return s2 * (1.0 + sdist / (2.0 * a2 * l2)) ** (-a2)


if __name__ == "__main__":
    key = jax.random.PRNGKey(0)
    k_sc, k_al, k_ls, k_l1, k_l2 = jax.random.split(key, 5)

    # Small synthetic shapes: K latent kernels, M inducing points, N query points, D dims.
    K, M, N, D = 4, 16, 24, 3

    scale = jax.random.uniform(k_sc, (K,), jnp.float32, 0.5, 1.5)
    alpha = jax.random.uniform(k_al, (K,), jnp.float32, 0.5, 2.0)
    lengthscale = jax.random.uniform(k_ls, (K,), jnp.float32, 0.5, 2.0)

    locations1 = jax.random.normal(k_l1, (M, D), jnp.float32)
    locations2 = jax.random.normal(k_l2, (N, D), jnp.float32)

    out = rq_kernel_forward(scale, alpha, lengthscale, locations1, locations2)
    out = jax.block_until_ready(out)

    ref = rq_kernel_reference(scale, alpha, lengthscale, locations1, locations2)
    assert out.shape == (K, M, N)
    assert jnp.allclose(out, ref, rtol=1e-4, atol=1e-5)

    print("KERNEL_OK")
</pallas_src>

<mosaic_0001>
module attributes {stable_mosaic.version = 11 : i64} {
  func.func @_rq_kernel(%arg0: i32, %arg1: i32, %arg2: i32, %arg3: memref<4xf32, #tpu.memory_space<smem>>, %arg4: memref<4xf32, #tpu.memory_space<smem>>, %arg5: memref<4xf32, #tpu.memory_space<smem>>, %arg6: memref<8x8xf32, #tpu.memory_space<vmem>>, %arg7: memref<8x128xf32, #tpu.memory_space<vmem>>, %arg8: memref<1x8x128xf32, #tpu.memory_space<vmem>>, %arg9: memref<8x128xf32, #tpu.memory_space<vmem>>) attributes {dimension_semantics = [#tpu.dimension_semantics<parallel>, #tpu.dimension_semantics<parallel>, #tpu.dimension_semantics<arbitrary>], iteration_bounds = array<i64: 2, 1, 4>, scalar_prefetch = 0 : i64, scratch_operands = 1 : i64, tpu.core_type = #tpu.core_type<tc>, window_params = [{transform_indices = @transform_0, window_bounds = array<i64: 4>}, {transform_indices = @transform_1, window_bounds = array<i64: 4>}, {transform_indices = @transform_2, window_bounds = array<i64: 4>}, {transform_indices = @transform_3, window_bounds = array<i64: 8, 8>}, {transform_indices = @transform_4, window_bounds = array<i64: 8, 128>}, {transform_indices = @transform_5, window_bounds = array<i64: 1, 8, 128>}]} {
    %c0_i32 = arith.constant 0 : i32
    %0 = arith.cmpi eq, %arg2, %c0_i32 : i32
    %1 = arith.extui %0 : i1 to i32
    %c0_i32_0 = arith.constant 0 : i32
    %2 = arith.cmpi ne, %1, %c0_i32_0 : i32
    scf.if %2 {
      %c0_5 = arith.constant 0 : index
      %c0_6 = arith.constant 0 : index
      %23 = vector.load %arg6[%c0_5, %c0_6] : memref<8x8xf32, #tpu.memory_space<vmem>>, vector<8x8xf32>
      %c0_7 = arith.constant 0 : index
      %c0_8 = arith.constant 0 : index
      %24 = vector.load %arg7[%c0_7, %c0_8] : memref<8x128xf32, #tpu.memory_space<vmem>>, vector<8x128xf32>
      %cst_9 = arith.constant 0.000000e+00 : f32
      %25 = vector.broadcast %cst_9 : f32 to vector<8x128xf32>
      %26 = vector.extract_strided_slice %23 {offsets = [0, 0], sizes = [8, 1], strides = [1, 1]} : vector<8x8xf32> to vector<8x1xf32>
      %27 = vector.extract_strided_slice %24 {offsets = [0, 0], sizes = [1, 128], strides = [1, 1]} : vector<8x128xf32> to vector<1x128xf32>
      %28 = vector.broadcast %26 : vector<8x1xf32> to vector<8x128xf32>
      %29 = vector.broadcast %27 : vector<1x128xf32> to vector<8x128xf32>
      %30 = arith.subf %28, %29 : vector<8x128xf32>
      %31 = arith.mulf %30, %30 : vector<8x128xf32>
      %32 = arith.addf %25, %31 : vector<8x128xf32>
      %33 = vector.extract_strided_slice %23 {offsets = [0, 1], sizes = [8, 1], strides = [1, 1]} : vector<8x8xf32> to vector<8x1xf32>
      %34 = vector.extract_strided_slice %24 {offsets = [1, 0], sizes = [1, 128], strides = [1, 1]} : vector<8x128xf32> to vector<1x128xf32>
      %35 = vector.broadcast %33 : vector<8x1xf32> to vector<8x128xf32>
      %36 = vector.broadcast %34 : vector<1x128xf32> to vector<8x128xf32>
      %37 = arith.subf %35, %36 : vector<8x128xf32>
      %38 = arith.mulf %37, %37 : vector<8x128xf32>
      %39 = arith.addf %32, %38 : vector<8x128xf32>
      %40 = vector.extract_strided_slice %23 {offsets = [0, 2], sizes = [8, 1], strides = [1, 1]} : vector<8x8xf32> to vector<8x1xf32>
      %41 = vector.extract_strided_slice %24 {offsets = [2, 0], sizes = [1, 128], strides = [1, 1]} : vector<8x128xf32> to vector<1x128xf32>
      %42 = vector.broadcast %40 : vector<8x1xf32> to vector<8x128xf32>
      %43 = vector.broadcast %41 : vector<1x128xf32> to vector<8x128xf32>
      %44 = arith.subf %42, %43 : vector<8x128xf32>
      %45 = arith.mulf %44, %44 : vector<8x128xf32>
      %46 = arith.addf %39, %45 : vector<8x128xf32>
      %c0_10 = arith.constant 0 : index
      %c0_11 = arith.constant 0 : index
      %47 = vector.load %arg9[%c0_10, %c0_11] : memref<8x128xf32, #tpu.memory_space<vmem>>, vector<8x128xf32>
      tpu.vector_store %arg9[%c0_10, %c0_11], %46 {strides = array<i32>} : memref<8x128xf32, #tpu.memory_space<vmem>>, vector<8x128xf32>,
    } else {
    }
    %c0 = arith.constant 0 : index
    %c0_1 = arith.constant 0 : index
    %3 = vector.load %arg9[%c0, %c0_1] : memref<8x128xf32, #tpu.memory_space<vmem>>, vector<8x128xf32>
    %4 = arith.index_cast %arg2 : i32 to index
    %5 = memref.load %arg3[%4] : memref<4xf32, #tpu.memory_space<smem>>
    %6 = vector.broadcast %5 : f32 to vector<8x128xf32>
    %7 = arith.mulf %3, %6 : vector<8x128xf32>
    %cst = arith.constant 1.000000e+00 : f32
    %8 = vector.broadcast %cst : f32 to vector<8x128xf32>
    %9 = arith.addf %8, %7 : vector<8x128xf32>
    %10 = arith.index_cast %arg2 : i32 to index
    %11 = memref.load %arg5[%10] : memref<4xf32, #tpu.memory_space<smem>>
    %12 = arith.index_cast %arg2 : i32 to index
    %13 = memref.load %arg4[%12] : memref<4xf32, #tpu.memory_space<smem>>
    %14 = math.log %9 : vector<8x128xf32>
    %15 = vector.broadcast %13 : f32 to vector<8x128xf32>
    %16 = arith.mulf %15, %14 : vector<8x128xf32>
    %17 = vector.broadcast %11 : f32 to vector<8x128xf32>
    %18 = arith.addf %17, %16 : vector<8x128xf32>
    %19 = math.exp %18 : vector<8x128xf32>
    %c0_2 = arith.constant 0 : index
    %c0_3 = arith.constant 0 : index
    %c0_4 = arith.constant 0 : index
    %20 = vector.load %arg8[%c0_2, %c0_3, %c0_4] : memref<1x8x128xf32, #tpu.memory_space<vmem>>, vector<1x8x128xf32>
    %21 = vector.shape_cast %20 : vector<1x8x128xf32> to vector<8x128xf32>
    %22 = vector.shape_cast %19 : vector<8x128xf32> to vector<1x8x128xf32>
    tpu.vector_store %arg8[%c0_2, %c0_3, %c0_4], %22 {strides = array<i32>} : memref<1x8x128xf32, #tpu.memory_space<vmem>>, vector<1x8x128xf32>,
    return
  }
  func.func @transform_0(%arg0: i32, %arg1: i32, %arg2: i32) -> i32 {
    %c0_i32 = arith.constant 0 : i32
    %c0_i32_0 = arith.constant 0 : i32
    return %c0_i32 : i32
  }
  func.func @transform_1(%arg0: i32, %arg1: i32, %arg2: i32) -> i32 {
    %c0_i32 = arith.constant 0 : i32
    %c0_i32_0 = arith.constant 0 : i32
    return %c0_i32 : i32
  }
  func.func @transform_2(%arg0: i32, %arg1: i32, %arg2: i32) -> i32 {
    %c0_i32 = arith.constant 0 : i32
    %c0_i32_0 = arith.constant 0 : i32
    return %c0_i32 : i32
  }
  func.func @transform_3(%arg0: i32, %arg1: i32, %arg2: i32) -> (i32, i32) {
    %c0_i32 = arith.constant 0 : i32
    %c0_i32_0 = arith.constant 0 : i32
    return %arg0, %c0_i32 : i32, i32
  }
  func.func @transform_4(%arg0: i32, %arg1: i32, %arg2: i32) -> (i32, i32) {
    %c0_i32 = arith.constant 0 : i32
    %c0_i32_0 = arith.constant 0 : i32
    return %c0_i32, %arg1 : i32, i32
  }
  func.func @transform_5(%arg0: i32, %arg1: i32, %arg2: i32) -> (i32, i32, i32) {
    %c0_i32 = arith.constant 0 : i32
    return %arg2, %arg0, %arg1 : i32, i32, i32
  }
}

</mosaic_0001>

<llo_original>
// kernel: tpu_custom_call.1
$region0: #{tpu_custom_call.1}
  #allocation0 [shape = 'u32[]', space=smem, size = 0x4, offset = 0x4, fixed_abs, tag = 'smem constant byte address 0x4 - core index']
  #allocation1 [shape = 'u32[144,128]{1,0:T(1,128)}', space=vmem, size = 0x12000, scoped, tag = 'internal scratch']
  #allocation2 [shape = 'f32[8,128]{1,0:T(8,128)}', space=vmem, size = 0x1000, scoped, tag = 'scratch operand']
  %s0 = inlined_call_operand.vmem [shape: f32[4], index: 0, kind: input, shape index: {}]
  %s1 = inlined_call_operand.vmem [shape: f32[4], index: 1, kind: input, shape index: {}]
  %s2 = inlined_call_operand.vmem [shape: f32[4], index: 2, kind: input, shape index: {}]
  %s3 = inlined_call_operand.vmem [shape: f32[16,8], index: 3, kind: input, shape index: {}]
  %s4 = inlined_call_operand.vmem [shape: f32[8,24], index: 4, kind: input, shape index: {}]
  %s5 = inlined_call_operand.hbm [shape: f32[4,16,24], index: 5, kind: output, shape index: {}]
  %s6 = sld [smem:[#allocation0]]
  $region69: #{tpu_custom_call.1} parent=0
    _
  %s8 = ssub.s32 1, %s6
  %s9 = scalar_select 0, %s8, %s6
  $region1: #{tpu_custom_call.1} parent=0
    #allocation3 [shape = 'u8[512]{0}', space=smem, size = 0x200, scoped, tag = 'input window, operand 0, single buffered']
    #allocation4 [shape = 's32[2]{0}', space=sflag, size = 0x8, scoped, tag = 'scoped memory for tpu_custom_call.1']
    #allocation5 [shape = 's32[2]{0}', space=sflag, size = 0x8, scoped, tag = 'scoped memory for tpu_custom_call.1']
    #allocation6 [shape = 'u8[512]{0}', space=smem, size = 0x200, scoped, tag = 'input window, operand 1, single buffered']
    #allocation7 [shape = 's32[1]{0}', space=sflag, size = 0x4, scoped, tag = 'scoped memory for tpu_custom_call.1']
    #allocation8 [shape = 'u8[512]{0}', space=smem, size = 0x200, scoped, tag = 'input window, operand 2, single buffered']
    #allocation9 [shape = 'u8[8192]{0}', space=vmem, size = 0x2000, scoped, tag = 'output window, operand 0']
    %10 = vsyncpa [#allocation5], 0
    %11 = vsyncpa [#allocation7], 0
    %12 = vsyncpa [#allocation4], 0
    %s13 = scalar_lea.sflag [#allocation4], 1
    %14 = vsyncpa %s13, 0
    loop: start=0, step=1, limit=10
    $region2: #{tpu_custom_call.1} parent=1 // loop_pre_header
      _
    $region3: #{tpu_custom_call.1} parent=1 // loop_header
      %s16 = sphi 0, %s20
      %p17 = scmp.ge.s32.totalorder %s16, 10
      %s23 = sphi 0, %s42
      %s24 = sphi 0, %s38
      %s25 = sphi 0, %s34
      %s26 = sphi 0, %s23
      %s27 = sphi 0, %s24
      %s28 = sphi 0, %s25
      %s29 = sphi 0, %s26
      %s30 = sphi 0, %s27
      %s31 = sphi 0, %s28
      %s43 = sphi 0, %s43
      %s45 = sphi 0, %s43
      %s46 = sphi 0, %s45
      %s60 = sphi 0, %s46
      %s64 = sphi 0, %s64
      %s66 = sphi 0, %s64
      %s67 = sphi 0, %s66
      %s81 = sphi 0, %s67
      %s85 = sphi 0, %s85
      %s87 = sphi 0, %s85
      %s88 = sphi 0, %s87
      %s102 = sphi 0, %s88
      %s108 = sphi 0, %s110
      %s111 = sphi 0, %s108
      %s112 = sphi 0, %s111
      %s128 = sphi 0, %s112
      %s134 = sphi 0, %s136
      %s137 = sphi 0, %s134
      %s138 = sphi 0, %s137
      %s154 = sphi 0, %s138
      %s164 = sphi 0, %s166
      %s167 = sphi 0, %s164
      %s168 = sphi 0, %s167
      %s184 = sphi 0, %s168
    $region4: #{tpu_custom_call.1} parent=1 // loop_header_branch
      %19 = sbr.rel (%p17) target = $region8
    $region5: #{tpu_custom_call.1} parent=1 // loop_body
      %s21 = ssub.s32 %s16, 1
      %s22 = ssub.s32 %s16, 2
      %s32 = sadd.s32 1, %s25
      %p33 = scmp.ge.s32.totalorder %s32, 4
      %s34 = scalar_select %p33, 0, %s32
      %s35 = sadd.s32 1, %s24
      %s36 = scalar_select %p33, %s35, %s24
      %p37 = scmp.ge.s32.totalorder %s36, 1
      %s38 = scalar_select %p37, 0, %s36
      %s39 = sadd.s32 1, %s23
      %s40 = scalar_select %p37, %s39, %s23
      %p41 = scmp.ge.s32.totalorder %s40, 2
      %s42 = scalar_select %p41, 0, %s40
      %s44 = sadd.s32 %s43, 1
      %p47 = scmp.eq.s32.totalorder %s16, 7
      %p48 = scmp.ne.s32.totalorder %s43, %s45
      %p49 = scmp.eq.s32.totalorder %s16, 0
      %p50 = por %p48, %p49
      %p51 = scmp.ne.s32.totalorder %s43, %s45
      %p52 = scmp.eq.s32.totalorder %s21, 7
      %p53 = por %p51, %p52
      %p54 = scmp.ne.s32.totalorder %s45, %s46
      %p55 = scmp.eq.s32.totalorder %s21, 0
      %p56 = por %p54, %p55
      %p57 = scmp.ne.s32.totalorder %s45, %s46
      %p58 = scmp.eq.s32.totalorder %s22, 7
      %p59 = por %p57, %p58
      %p61 = scmp.ne.s32.totalorder %s46, %s60
      %p62 = scmp.eq.s32.totalorder %s22, 0
      %p63 = por %p61, %p62
      %s65 = sadd.s32 %s64, 1
      %p68 = scmp.eq.s32.totalorder %s16, 7
      %p69 = scmp.ne.s32.totalorder %s64, %s66
      %p70 = scmp.eq.s32.totalorder %s16, 0
      %p71 = por %p69, %p70
      %p72 = scmp.ne.s32.totalorder %s64, %s66
      %p73 = scmp.eq.s32.totalorder %s21, 7
      %p74 = por %p72, %p73
      %p75 = scmp.ne.s32.totalorder %s66, %s67
      %p76 = scmp.eq.s32.totalorder %s21, 0
      %p77 = por %p75, %p76
      %p78 = scmp.ne.s32.totalorder %s66, %s67
      %p79 = scmp.eq.s32.totalorder %s22, 7
      %p80 = por %p78, %p79
      %p82 = scmp.ne.s32.totalorder %s67, %s81
      %p83 = scmp.eq.s32.totalorder %s22, 0
      %p84 = por %p82, %p83
      %s86 = sadd.s32 %s85, 1
      %p89 = scmp.eq.s32.totalorder %s16, 7
      %p90 = scmp.ne.s32.totalorder %s85, %s87
      %p91 = scmp.eq.s32.totalorder %s16, 0
      %p92 = por %p90, %p91
      %p93 = scmp.ne.s32.totalorder %s85, %s87
      %p94 = scmp.eq.s32.totalorder %s21, 7
      %p95 = por %p93, %p94
      %p96 = scmp.ne.s32.totalorder %s87, %s88
      %p97 = scmp.eq.s32.totalorder %s21, 0
      %p98 = por %p96, %p97
      %p99 = scmp.ne.s32.totalorder %s87, %s88
      %p100 = scmp.eq.s32.totalorder %s22, 7
      %p101 = por %p99, %p100
      %p103 = scmp.ne.s32.totalorder %s88, %s102
      %p104 = scmp.eq.s32.totalorder %s22, 0
      %p105 = por %p103, %p104
      %s106 = ssub.s32 %s23, %s42
      %p107 = scmp.eq.s32.totalorder %s106, 0
      %s109 = sadd.s32 %s108, 1
      %s110 = scalar_select %p107, %s108, %s109
      %p113 = pneg %p107
      %p114 = scmp.eq.s32.totalorder %s16, 7
      %p115 = por %p113, %p114
      %p116 = scmp.ne.s32.totalorder %s108, %s111
      %p117 = scmp.eq.s32.totalorder %s16, 0
      %p118 = por %p116, %p117
      %p119 = scmp.ne.s32.totalorder %s108, %s111
      %p120 = scmp.eq.s32.totalorder %s21, 7
      %p121 = por %p119, %p120
      %p122 = scmp.ne.s32.totalorder %s111, %s112
      %p123 = scmp.eq.s32.totalorder %s21, 0
      %p124 = por %p122, %p123
      %p125 = scmp.ne.s32.totalorder %s111, %s112
      %p126 = scmp.eq.s32.totalorder %s22, 7
      %p127 = por %p125, %p126
      %p129 = scmp.ne.s32.totalorder %s112, %s128
      %p130 = scmp.eq.s32.totalorder %s22, 0
      %p131 = por %p129, %p130
      %s132 = ssub.s32 %s24, %s38
      %p133 = scmp.eq.s32.totalorder %s132, 0
      %s135 = sadd.s32 %s134, 1
      %s136 = scalar_select %p133, %s134, %s135
      %p139 = pneg %p133
      %p140 = scmp.eq.s32.totalorder %s16, 7
      %p141 = por %p139, %p140
      %p142 = scmp.ne.s32.totalorder %s134, %s137
      %p143 = scmp.eq.s32.totalorder %s16, 0
      %p144 = por %p142, %p143
      %p145 = scmp.ne.s32.totalorder %s134, %s137
      %p146 = scmp.eq.s32.totalorder %s21, 7
      %p147 = por %p145, %p146
      %p148 = scmp.ne.s32.totalorder %s137, %s138
      %p149 = scmp.eq.s32.totalorder %s21, 0
      %p150 = por %p148, %p149
      %p151 = scmp.ne.s32.totalorder %s137, %s138
      %p152 = scmp.eq.s32.totalorder %s22, 7
      %p153 = por %p151, %p152
      %p155 = scmp.ne.s32.totalorder %s138, %s154
      %p156 = scmp.eq.s32.totalorder %s22, 0
      %p157 = por %p155, %p156
      %s158 = ssub.s32 %s25, %s34
      %s159 = ssub.s32 %s23, %s42
      %s160 = sor.u32 %s158, %s159
      %s161 = ssub.s32 %s24, %s38
      %s162 = sor.u32 %s160, %s161
      %p163 = scmp.eq.s32.totalorder %s162, 0
      %s165 = sadd.s32 %s164, 1
      %s166 = scalar_select %p163, %s164, %s165
      %p169 = pneg %p163
      %p170 = scmp.eq.s32.totalorder %s16, 7
      %p171 = por %p169, %p170
      %p172 = scmp.ne.s32.totalorder %s164, %s167
      %p173 = scmp.eq.s32.totalorder %s16, 0
      %p174 = por %p172, %p173
      %p175 = scmp.ne.s32.totalorder %s164, %s167
      %p176 = scmp.eq.s32.totalorder %s21, 7
      %p177 = por %p175, %p176
      %p178 = scmp.ne.s32.totalorder %s167, %s168
      %p179 = scmp.eq.s32.totalorder %s21, 0
      %p180 = por %p178, %p179
      %p181 = scmp.ne.s32.totalorder %s167, %s168
      %p182 = scmp.eq.s32.totalorder %s22, 7
      %p183 = por %p181, %p182
      %p185 = scmp.ne.s32.totalorder %s168, %s184
      %p186 = scmp.eq.s32.totalorder %s22, 0
      %p187 = por %p185, %p186
      %p188 = scmp.le.s32.totalorder 1, %s16
      %p189 = scmp.lt.s32.totalorder %s16, 9
      %p190 = pnand %p188, %p189
      %p191 = pneg %p190
      // Predicated region
      $region9: #{tpu_custom_call.1} parent=5 // pred_check
        _
      $region10: #{tpu_custom_call.1} parent=5 // pred_check_branch
        %193 = sbr.rel (%p190) target = $region12
      $region11: #{tpu_custom_call.1} parent=5 // pred_region
        %s194 = ssub.s32 %s16, 1
        // Predicated region
        $region13: #{tpu_custom_call.1} parent=11 // pred_check
          %p195 = pneg %p56
        $region14: #{tpu_custom_call.1} parent=11 // pred_check_branch
          %197 = sbr.rel (%p195) target = $region16
        $region15: #{tpu_custom_call.1} parent=11 // pred_region
          %s199 = ssub.s32 16, 16
          %200 = vsyncadd [#allocation5], %s199
          %s202 = sshll.u32 %s0, 4
          %s203 = int_to_ptr.vmem [resolvable:$true] %s202
          %205 = dma.vmem_to_smem %s203, 16, [#allocation3], [#allocation5]
        $region16: #{tpu_custom_call.1} parent=11 // pred_fallthru
          _
        // Predicated region
        $region17: #{tpu_custom_call.1} parent=11 // pred_check
          %p206 = pneg %p77
        $region18: #{tpu_custom_call.1} parent=11 // pred_check_branch
          %208 = sbr.rel (%p206) target = $region20
        $region19: #{tpu_custom_call.1} parent=11 // pred_region
          %s210 = ssub.s32 16, 16
          %211 = vsyncadd [#allocation7], %s210
          %s213 = sshll.u32 %s1, 4
          %s214 = int_to_ptr.vmem [resolvable:$true] %s213
          %216 = dma.vmem_to_smem %s214, 16, [#allocation6], [#allocation7]
        $region20: #{tpu_custom_call.1} parent=11 // pred_fallthru
          _
        // Predicated region
        $region21: #{tpu_custom_call.1} parent=11 // pred_check
          %p217 = pneg %p98
        $region22: #{tpu_custom_call.1} parent=11 // pred_check_branch
          %219 = sbr.rel (%p217) target = $region24
        $region23: #{tpu_custom_call.1} parent=11 // pred_region
          %s221 = ssub.s32 16, 16
          %222 = vsyncadd [#allocation7], %s221
          %s224 = sshll.u32 %s2, 4
          %s225 = int_to_ptr.vmem [resolvable:$true] %s224
          %227 = dma.vmem_to_smem %s225, 16, [#allocation8], [#allocation7]
        $region24: #{tpu_custom_call.1} parent=11 // pred_fallthru
          _
        // Predicated region
        $region25: #{tpu_custom_call.1} parent=11 // pred_check
          %p228 = pneg %p150
        $region26: #{tpu_custom_call.1} parent=11 // pred_check_branch
          %230 = sbr.rel (%p228) target = $region28
        $region27: #{tpu_custom_call.1} parent=11 // pred_region
          %p231 = scmp.lt.s32.totalorder %s27, 0
          %s232 = scalar_select %p231, %s27, 0
          %s233 = smul.addr %s232, 8
          %s234 = scalar_lea.vmem %s4, %s233
        $region28: #{tpu_custom_call.1} parent=11 // pred_fallthru
          _
      $region12: #{tpu_custom_call.1} parent=5 // pred_fallthru
        _
      %p235 = scmp.lt.s32.totalorder %s16, 8
      // Predicated region
      $region29: #{tpu_custom_call.1} parent=5 // pred_check
        %p236 = pneg %p235
      $region30: #{tpu_custom_call.1} parent=5 // pred_check_branch
        %238 = sbr.rel (%p236) target = $region32
      $region31: #{tpu_custom_call.1} parent=5 // pred_region
        // Predicated region
        $region33: #{tpu_custom_call.1} parent=31 // pred_check
          %p239 = pneg %p118
        $region34: #{tpu_custom_call.1} parent=31 // pred_check_branch
          %241 = sbr.rel (%p239) target = $region36
        $region35: #{tpu_custom_call.1} parent=31 // pred_region
          %p242 = scmp.lt.s32.totalorder %s23, 1
          %s243 = scalar_select %p242, %s23, 1
          %s244 = smul.addr %s243, 8
          %s245 = scalar_lea.vmem %s3, %s244
        $region36: #{tpu_custom_call.1} parent=31 // pred_fallthru
          _
      $region32: #{tpu_custom_call.1} parent=5 // pred_fallthru
        _
      %p246 = scmp.le.s32.totalorder 1, %s16
      %p247 = scmp.lt.s32.totalorder %s16, 9
      %p248 = pnand %p246, %p247
      %p249 = pneg %p248
      // Predicated region
      $region37: #{tpu_custom_call.1} parent=5 // pred_check
        _
      $region38: #{tpu_custom_call.1} parent=5 // pred_check_branch
        %251 = sbr.rel (%p248) target = $region40
      $region39: #{tpu_custom_call.1} parent=5 // pred_region
        %s252 = ssub.s32 %s16, 1
        // Predicated region
        $region41: #{tpu_custom_call.1} parent=39 // pred_check
          %p253 = pneg %p56
        $region42: #{tpu_custom_call.1} parent=39 // pred_check_branch
          %255 = sbr.rel (%p253) target = $region44
        $region43: #{tpu_custom_call.1} parent=39 // pred_region
          %256 = dma.done [#allocation5], 16
        $region44: #{tpu_custom_call.1} parent=39 // pred_fallthru
          _
        // Predicated region
        $region45: #{tpu_custom_call.1} parent=39 // pred_check
          %p257 = pneg %p77
        $region46: #{tpu_custom_call.1} parent=39 // pred_check_branch
          %259 = sbr.rel (%p257) target = $region48
        $region47: #{tpu_custom_call.1} parent=39 // pred_region
          %260 = dma.done [#allocation7], 16
        $region48: #{tpu_custom_call.1} parent=39 // pred_fallthru
          _
        // Predicated region
        $region49: #{tpu_custom_call.1} parent=39 // pred_check
          %p261 = pneg %p98
        $region50: #{tpu_custom_call.1} parent=39 // pred_check_branch
          %263 = sbr.rel (%p261) target = $region52
        $region51: #{tpu_custom_call.1} parent=39 // pred_region
          %264 = dma.done [#allocation7], 16
        $region52: #{tpu_custom_call.1} parent=39 // pred_fallthru
          _
        %265 = sfence
        %p266 = pneg %p56
        %p267 = pneg %p53
        %p268 = pneg %p77
        %p269 = pneg %p74
        %p270 = pneg %p98
        %p271 = pneg %p95
        %p272 = scmp.lt.s32.totalorder %s26, 1
        %s273 = scalar_select %p272, %s26, 1
        %s274 = smul.addr %s273, 8
        %s275 = scalar_lea.vmem %s3, %s274
        %p276 = pneg %p124
        %p277 = pneg %p121
        %p278 = scmp.lt.s32.totalorder %s27, 0
        %s279 = scalar_select %p278, %s27, 0
        %s280 = smul.addr %s279, 8
        %s281 = scalar_lea.vmem %s4, %s280
        %p282 = pneg %p150
        %p283 = pneg %p147
        %p284 = pneg %p180
        %p285 = pneg %p177
        %s286 = sand.u32 %s167, 1
        %s287 = scalar_lea.sflag [#allocation4], %s286
        %s288 = sand.u32 %s167, 1
        %s289 = smul.addr %s288, 8
        %s290 = scalar_lea.vmem [#allocation9], %s289
        %p291 = scmp.lt.s32.totalorder %s26, 1
        %s292 = scalar_select %p291, %s26, 1
        %s293 = smul.addr %s292, 8
        %s294 = scalar_lea.vmem %s3, %s293
        %p295 = scmp.lt.s32.totalorder %s27, 0
        %s296 = scalar_select %p295, %s27, 0
        %s297 = smul.addr %s296, 8
        %s298 = scalar_lea.vmem %s4, %s297
        %p299 = scmp.eq.s32.totalorder %s28, 0
        // Predicated region
        $region53: #{tpu_custom_call.1} parent=39 // pred_check
          %p300 = pneg %p299
        $region54: #{tpu_custom_call.1} parent=39 // pred_check_branch
          %302 = sbr.rel (%p300) target = $region56
        $region55: #{tpu_custom_call.1} parent=39 // pred_region
          %v303 = vld [vmem:[%s294] sm:$0xff]
          %v304 = vld [vmem:[%s298] sm:$0xff]
          %306 = vset.pattern.permute.xlu0 0
          %307 = vperm.xlu0 %306, %v303
          %v308 = vpop.permute.xlu0 %307
          %v310 = vlaneseq
          %v311 = vshrl.u32 %v310, 7
          %v312 = vsub.s32 0, %v311
          %v313 = vrot.slane %v304, %v312
          %v314 = vsub.f32 %v308, %v313
          %v315 = vmul.f32 %v314, %v314
          %v316 = vadd.f32 %v315, 0.0
          %317 = vset.pattern.permute.xlu0 1
          %318 = vperm.xlu0 %317, %v303
          %v319 = vpop.permute.xlu0 %318
          %v321 = vlaneseq
          %v322 = vshrl.u32 %v321, 7
          %v323 = vsub.s32 1, %v322
          %v324 = vrot.slane %v304, %v323
          %v325 = vsub.f32 %v319, %v324
          %v326 = vmul.f32 %v325, %v325
          %v327 = vadd.f32 %v316, %v326
          %328 = vset.pattern.permute.xlu0 2
          %329 = vperm.xlu0 %328, %v303
          %v330 = vpop.permute.xlu0 %329
          %v332 = vlaneseq
          %v333 = vshrl.u32 %v332, 7
          %v334 = vsub.s32 2, %v333
          %v335 = vrot.slane %v304, %v334
          %v336 = vsub.f32 %v330, %v335
          %v337 = vmul.f32 %v336, %v336
          %v338 = vadd.f32 %v327, %v337
          %339 = vst [vmem:[#allocation2] sm:$0xff] %v338
        $region56: #{tpu_custom_call.1} parent=39 // pred_fallthru
          _
        %v340 = vld [vmem:[#allocation2] sm:$0xff]
        %s341 = sld [smem:[#allocation3 + %s28]]
        %v342 = vstv %s341
        %v343 = vmul.f32 %v340, %v342
        %v344 = vadd.f32 %v343, 1.0
        %s345 = sld [smem:[#allocation8 + %s28]]
        %s346 = sld [smem:[#allocation6 + %s28]]
        %v347 = vlog2.pop %v344
        %v348 = vmul.f32 %v347, 0.6931472
        %v349 = vstv %s346
        %v350 = vmul.f32 %v349, %v348
        %v351 = vstv %s345
        %v352 = vadd.f32 %v351, %v350
        %v353 = vmul.f32 %v352, 1.442695
        %v354 = vpow.pop %v353
        %355 = vst [vmem:[%s290] sm:$0xff] %v354
        %s356 = sand.u32 %s167, 1
        %s357 = scalar_lea.sflag [#allocation4], %s356
        %s358 = sand.u32 %s167, 1
        %s359 = smul.addr %s358, 8
        %s360 = scalar_lea.vmem [#allocation9], %s359
        // Predicated region
        $region57: #{tpu_custom_call.1} parent=39 // pred_check
          %p361 = pneg %p177
        $region58: #{tpu_custom_call.1} parent=39 // pred_check_branch
          %363 = sbr.rel (%p361) target = $region60
        $region59: #{tpu_custom_call.1} parent=39 // pred_region
          %s365 = ssub.s32 128, 128
          %366 = vsyncadd %s357, %s365
          %s367 = sadd.s32 %s27, %s26
          %s368 = smul.addr %s28, 2
          %s369 = sadd.s32 %s367, %s368
          %s370 = smul.addr %s369, 128
          %s371 = scalar_lea.hbm %s5, %s370
          %s373 = sshll.u32 %s360, 4
          %s374 = int_to_ptr.vmem [resolvable:$true] %s373
          %376 = dma.vmem_to_hbm [thread:$0]  %s374, 128, %s371, %s357
        $region60: #{tpu_custom_call.1} parent=39 // pred_fallthru
          _
      $region40: #{tpu_custom_call.1} parent=5 // pred_fallthru
        _
      %p377 = scmp.le.s32.totalorder 2, %s16
      // Predicated region
      $region61: #{tpu_custom_call.1} parent=5 // pred_check
        %p378 = pneg %p377
      $region62: #{tpu_custom_call.1} parent=5 // pred_check_branch
        %380 = sbr.rel (%p378) target = $region64
      $region63: #{tpu_custom_call.1} parent=5 // pred_region
        %s381 = ssub.s32 %s16, 2
        // Predicated region
        $region65: #{tpu_custom_call.1} parent=63 // pred_check
          %p382 = pneg %p183
        $region66: #{tpu_custom_call.1} parent=63 // pred_check_branch
          %384 = sbr.rel (%p382) target = $region68
        $region67: #{tpu_custom_call.1} parent=63 // pred_region
          %s385 = sand.u32 %s168, 1
          %s386 = scalar_lea.sflag [#allocation4], %s385
          %s387 = sand.u32 %s168, 1
          %s388 = smul.addr %s387, 8
          %s389 = scalar_lea.vmem [#allocation9], %s388
          %390 = dma.done %s386, 128
        $region68: #{tpu_custom_call.1} parent=63 // pred_fallthru
          _
      $region64: #{tpu_custom_call.1} parent=5 // pred_fallthru
        _
    $region6: #{tpu_custom_call.1} parent=1 // loop_footer
      %s20 = sadd.s32 1, %s16
    $region7: #{tpu_custom_call.1} parent=1 // loop_footer_branch
      %15 = sbr.rel target = $region3
    $region8: #{tpu_custom_call.1} parent=1 // loop_exit
      _
    %391 = vsyncpa [#allocation4], 1
    %s392 = scalar_lea.sflag [#allocation4], 1
    %393 = vsyncpa %s392, 1
    %394 = vsyncpa [#allocation5], 1
    %s395 = scalar_lea.sflag [#allocation5], 1
    %396 = vsyncpa %s395, 1
    %397 = vsyncpa [#allocation7], 1

</llo_original>
